<compile_context>
chip_gen: v6e
topology: v6e:2x2x1
jax: 0.10.0
libtpu: 0.0.40
codegen_flags: <defaults>
</compile_context>

<pallas_src>
import jax
import jax.numpy as jnp
import numpy as np
from jax import lax
from jax.experimental import pallas as pl
from jax.experimental.pallas import tpu as pltpu

_LANE = 128
_EPS = 1e-20


def _round_up(x, m):
    return ((x + m - 1) // m) * m


def _choose_tile(d, b):
    """Lane-aligned D-chunk: big enough to pipeline, small VMEM footprint."""
    d_aligned = _round_up(max(int(d), 1), _LANE)
    rows = max(_round_up(b, 8), 8)  # sublane-padded rows resident in VMEM
    cap = max(_LANE, ((2 * 1024 * 1024) // (4 * rows)) // _LANE * _LANE)
    return min(d_aligned, cap, 16384)


def _pad_cols(x2d, multiple):
    rem = (-x2d.shape[1]) % multiple
    if rem:
        x2d = jnp.pad(x2d, ((0, 0), (0, rem)))  # zeros: no effect on Grams/norms
    return x2d


def _make_kernel(b, d1, d2, k_s, k_p):
    inv_mean = 1.0 / float(d1 * d2)  # mean over the (unpadded) D1 x D2 matrix

    def kernel(s_ref, p_ref, o_ref, acc_s, acc_p):
        k = pl.program_id(0)
        nk = pl.num_programs(0)

        @pl.when(k == 0)
        def _init():
            acc_s[...] = jnp.zeros_like(acc_s)
            acc_p[...] = jnp.zeros_like(acc_p)

        # Cast in-kernel so bf16 activations stream over HBM as bf16.
        s = s_ref[...].astype(jnp.float32)
        p = p_ref[...].astype(jnp.float32)

        # Partial BxB Grams: contraction over the large, lane-resident D chunk.
        gs_part = lax.dot_general(
            s, s, (((1,), (1,)), ((), ())), preferred_element_type=jnp.float32)
        gp_part = lax.dot_general(
            p, p, (((1,), (1,)), ((), ())), preferred_element_type=jnp.float32)

        if k_s == k_p:  # static: both inputs have the same number of chunks
            acc_s[...] += gs_part
            acc_p[...] += gp_part
        else:
            @pl.when(k < k_s)
            def _acc_s():
                acc_s[...] += gs_part

            @pl.when(k < k_p)
            def _acc_p():
                acc_p[...] += gp_part

        @pl.when(k == nk - 1)
        def _finalize():
            gs = acc_s[...]
            gp = acc_p[...]
            rows = lax.broadcasted_iota(jnp.int32, (b, b), 0)
            cols = lax.broadcasted_iota(jnp.int32, (b, b), 1)
            eye = jnp.where(rows == cols, 1.0, 0.0).astype(jnp.float32)
            # Row norms come for free from the Gram diagonals.
            # TODO(synk): torch detaches these norms; forward value is identical,
            # but matching gradients would require a custom_vjp / stop_gradient.
            ns_r = jnp.sqrt(jnp.sum(gs * eye, axis=1, keepdims=True)) + _EPS
            ns_c = jnp.sqrt(jnp.sum(gs * eye, axis=0, keepdims=True)) + _EPS
            np_r = jnp.sqrt(jnp.sum(gp * eye, axis=1, keepdims=True)) + _EPS
            np_c = jnp.sqrt(jnp.sum(gp * eye, axis=0, keepdims=True)) + _EPS
            gs_n = gs / (ns_r * ns_c)
            gp_n = gp / (np_r * np_c)
            o_ref[0, 0] = jnp.sum(gs_n * gp_n) * inv_mean

    return kernel


def diff_loss(shared_input, private_input):
    """Pallas DiffLoss forward. Inputs: rank >= 2 arrays, same leading batch."""
    b = shared_input.shape[0]
    assert private_input.shape[0] == b
    s2d = shared_input.reshape(b, -1)   # flatten like torch .view(B, -1)
    p2d = private_input.reshape(b, -1)
    d1, d2 = s2d.shape[1], p2d.shape[1]

    td_s = _choose_tile(d1, b)
    td_p = _choose_tile(d2, b)
    s2d = _pad_cols(s2d, td_s)
    p2d = _pad_cols(p2d, td_p)
    k_s = s2d.shape[1] // td_s
    k_p = p2d.shape[1] // td_p
    k = max(k_s, k_p)

    if k_s == k:
        s_map = lambda kk: (0, kk)
    else:
        s_map = lambda kk: (0, jnp.minimum(kk, k_s - 1))
    if k_p == k:
        p_map = lambda kk: (0, kk)
    else:
        p_map = lambda kk: (0, jnp.minimum(kk, k_p - 1))

    flops = 2 * b * b * (s2d.shape[1] + p2d.shape[1])
    bytes_accessed = (s2d.size * s2d.dtype.itemsize
                      + p2d.size * p2d.dtype.itemsize + 4)

    out = pl.pallas_call(
        _make_kernel(b, d1, d2, k_s, k_p),
        out_shape=jax.ShapeDtypeStruct((1, 1), jnp.float32),
        grid_spec=pltpu.PrefetchScalarGridSpec(
            num_scalar_prefetch=0,
            grid=(k,),
            in_specs=[
                pl.BlockSpec((b, td_s), s_map),
                pl.BlockSpec((b, td_p), p_map),
            ],
            out_specs=pl.BlockSpec((1, 1), lambda kk: (0, 0),
                                   memory_space=pltpu.SMEM),
            scratch_shapes=[
                pltpu.VMEM((b, b), jnp.float32),
                pltpu.VMEM((b, b), jnp.float32),
            ],
        ),
        compiler_params=pltpu.CompilerParams(
            dimension_semantics=("arbitrary",),   # D-axis is a reduction
            vmem_limit_bytes=32 * 1024 * 1024,
        ),
        cost_estimate=pl.CostEstimate(
            flops=flops, transcendentals=0, bytes_accessed=bytes_accessed),
    )(s2d, p2d)
    return out[0, 0]


def _diff_loss_ref(shared_input, private_input):
    """Direct (non-Gram) formulation, for validation."""
    b = shared_input.shape[0]
    s = shared_input.reshape(b, -1).astype(jnp.float32)
    p = private_input.reshape(b, -1).astype(jnp.float32)
    s_n = s / (jnp.linalg.norm(s, axis=1, keepdims=True) + _EPS)
    p_n = p / (jnp.linalg.norm(p, axis=1, keepdims=True) + _EPS)
    c = s_n.T @ p_n
    return jnp.mean(c * c)


def _check(loss, ref):
    assert np.allclose(np.asarray(loss), np.asarray(ref),
                       rtol=2e-3, atol=1e-9), (loss, ref)


if __name__ == "__main__":
    key = jax.random.PRNGKey(0)
    k1, k2, k3 = jax.random.split(key, 3)

    # Case 1: canonical small NCHW feature maps (B=2, C=4, 16x16 -> D=1024).
    shared = jax.random.normal(k1, (2, 4, 16, 16), dtype=jnp.float32)
    private = jax.random.normal(k2, (2, 4, 16, 16), dtype=jnp.float32)
    loss = jax.block_until_ready(diff_loss(shared, private))
    ref = jax.block_until_ready(_diff_loss_ref(shared, private))
    _check(loss, ref)

    # Case 2: multi-chunk grid (D=20480 -> 2 chunks incl. zero padding) with
    # mismatched flattened sizes between the two inputs (exercises clamp path).
    shared2 = jax.random.normal(k3, (2, 20, 32, 32), dtype=jnp.float32)
    loss2 = jax.block_until_ready(diff_loss(shared2, private))
    ref2 = jax.block_until_ready(_diff_loss_ref(shared2, private))
    _check(loss2, ref2)

    print("KERNEL_OK")
</pallas_src>

<mosaic_0001>
module attributes {stable_mosaic.version = 11 : i64} {
  func.func @kernel(%arg0: i32, %arg1: memref<2x1024xf32, #tpu.memory_space<vmem>>, %arg2: memref<2x1024xf32, #tpu.memory_space<vmem>>, %arg3: memref<1x1xf32, #tpu.memory_space<smem>>, %arg4: memref<2x2xf32, #tpu.memory_space<vmem>>, %arg5: memref<2x2xf32, #tpu.memory_space<vmem>>) attributes {dimension_semantics = [#tpu.dimension_semantics<arbitrary>], iteration_bounds = array<i64: 1>, scalar_prefetch = 0 : i64, scratch_operands = 2 : i64, tpu.core_type = #tpu.core_type<tc>, window_params = [{transform_indices = @transform_0, window_bounds = array<i64: 2, 1024>}, {transform_indices = @transform_1, window_bounds = array<i64: 2, 1024>}, {transform_indices = @transform_2, window_bounds = array<i64: 1, 1>}]} {
    %c0_i32 = arith.constant 0 : i32
    %0 = arith.cmpi eq, %arg0, %c0_i32 : i32
    %1 = arith.extui %0 : i1 to i32
    %c0_i32_0 = arith.constant 0 : i32
    %2 = arith.cmpi ne, %1, %c0_i32_0 : i32
    scf.if %2 {
      %cst_15 = arith.constant 0.000000e+00 : f32
      %16 = vector.broadcast %cst_15 : f32 to vector<2x2xf32>
      %c0_16 = arith.constant 0 : index
      %c0_17 = arith.constant 0 : index
      %17 = vector.load %arg4[%c0_16, %c0_17] : memref<2x2xf32, #tpu.memory_space<vmem>>, vector<2x2xf32>
      tpu.vector_store %arg4[%c0_16, %c0_17], %16 {strides = array<i32>} : memref<2x2xf32, #tpu.memory_space<vmem>>, vector<2x2xf32>,
      %cst_18 = arith.constant 0.000000e+00 : f32
      %18 = vector.broadcast %cst_18 : f32 to vector<2x2xf32>
      %c0_19 = arith.constant 0 : index
      %c0_20 = arith.constant 0 : index
      %19 = vector.load %arg5[%c0_19, %c0_20] : memref<2x2xf32, #tpu.memory_space<vmem>>, vector<2x2xf32>
      tpu.vector_store %arg5[%c0_19, %c0_20], %18 {strides = array<i32>} : memref<2x2xf32, #tpu.memory_space<vmem>>, vector<2x2xf32>,
    } else {
    }
    %c0 = arith.constant 0 : index
    %c0_1 = arith.constant 0 : index
    %3 = vector.load %arg1[%c0, %c0_1] : memref<2x1024xf32, #tpu.memory_space<vmem>>, vector<2x1024xf32>
    %c0_2 = arith.constant 0 : index
    %c0_3 = arith.constant 0 : index
    %4 = vector.load %arg2[%c0_2, %c0_3] : memref<2x1024xf32, #tpu.memory_space<vmem>>, vector<2x1024xf32>
    %cst = arith.constant dense<0.000000e+00> : vector<2x2xf32>
    %5 = tpu.matmul %3, %3, %cst {dimension_numbers = #tpu.dot_dimension_numbers<[1], [1], [0], [0], [0, 0, 1, 0], [], []>} : vector<2x1024xf32>, vector<2x1024xf32>, vector<2x2xf32> -> vector<2x2xf32>
    %cst_4 = arith.constant dense<0.000000e+00> : vector<2x2xf32>
    %6 = tpu.matmul %4, %4, %cst_4 {dimension_numbers = #tpu.dot_dimension_numbers<[1], [1], [0], [0], [0, 0, 1, 0], [], []>} : vector<2x1024xf32>, vector<2x1024xf32>, vector<2x2xf32> -> vector<2x2xf32>
    %c0_5 = arith.constant 0 : index
    %c0_6 = arith.constant 0 : index
    %7 = vector.load %arg4[%c0_5, %c0_6] : memref<2x2xf32, #tpu.memory_space<vmem>>, vector<2x2xf32>
    %8 = arith.addf %7, %5 : vector<2x2xf32>
    %c0_7 = arith.constant 0 : index
    %c0_8 = arith.constant 0 : index
    %9 = vector.load %arg4[%c0_7, %c0_8] : memref<2x2xf32, #tpu.memory_space<vmem>>, vector<2x2xf32>
    tpu.vector_store %arg4[%c0_7, %c0_8], %8 {strides = array<i32>} : memref<2x2xf32, #tpu.memory_space<vmem>>, vector<2x2xf32>,
    %c0_9 = arith.constant 0 : index
    %c0_10 = arith.constant 0 : index
    %10 = vector.load %arg5[%c0_9, %c0_10] : memref<2x2xf32, #tpu.memory_space<vmem>>, vector<2x2xf32>
    %11 = arith.addf %10, %6 : vector<2x2xf32>
    %c0_11 = arith.constant 0 : index
    %c0_12 = arith.constant 0 : index
    %12 = vector.load %arg5[%c0_11, %c0_12] : memref<2x2xf32, #tpu.memory_space<vmem>>, vector<2x2xf32>
    tpu.vector_store %arg5[%c0_11, %c0_12], %11 {strides = array<i32>} : memref<2x2xf32, #tpu.memory_space<vmem>>, vector<2x2xf32>,
    %c0_i32_13 = arith.constant 0 : i32
    %13 = arith.cmpi eq, %arg0, %c0_i32_13 : i32
    %14 = arith.extui %13 : i1 to i32
    %c0_i32_14 = arith.constant 0 : i32
    %15 = arith.cmpi ne, %14, %c0_i32_14 : i32
    scf.if %15 {
      %c0_15 = arith.constant 0 : index
      %c0_16 = arith.constant 0 : index
      %16 = vector.load %arg4[%c0_15, %c0_16] : memref<2x2xf32, #tpu.memory_space<vmem>>, vector<2x2xf32>
      %c0_17 = arith.constant 0 : index
      %c0_18 = arith.constant 0 : index
      %17 = vector.load %arg5[%c0_17, %c0_18] : memref<2x2xf32, #tpu.memory_space<vmem>>, vector<2x2xf32>
      %18 = tpu.iota {dimensions = array<i32: 0>} : vector<2x2xi32>
      %19 = tpu.iota {dimensions = array<i32: 1>} : vector<2x2xi32>
      %20 = arith.cmpi eq, %18, %19 : vector<2x2xi32>
      %cst_19 = arith.constant 1.000000e+00 : f32
      %cst_20 = arith.constant 0.000000e+00 : f32
      %21 = vector.broadcast %cst_19 : f32 to vector<2x2xf32>
      %22 = vector.broadcast %cst_20 : f32 to vector<2x2xf32>
      %23 = arith.select %20, %21, %22 : vector<2x2xi1>, vector<2x2xf32>
      %24 = arith.mulf %16, %23 : vector<2x2xf32>
      %cst_21 = arith.constant dense<0.000000e+00> : vector<2xf32>
      %25 = vector.multi_reduction <add>, %24, %cst_21 [1] : vector<2x2xf32> to vector<2xf32>
      %26 = vector.shape_cast %25 : vector<2xf32> to vector<2x1xf32>
      %27 = math.sqrt %26 : vector<2x1xf32>
      %cst_22 = arith.constant 9.99999968E-21 : f32
      %28 = vector.broadcast %cst_22 : f32 to vector<2x1xf32>
      %29 = arith.addf %27, %28 : vector<2x1xf32>
      %30 = arith.mulf %16, %23 : vector<2x2xf32>
      %cst_23 = arith.constant dense<0.000000e+00> : vector<2xf32>
      %31 = vector.multi_reduction <add>, %30, %cst_23 [0] : vector<2x2xf32> to vector<2xf32>
      %32 = vector.shape_cast %31 : vector<2xf32> to vector<1x2xf32>
      %33 = math.sqrt %32 : vector<1x2xf32>
      %cst_24 = arith.constant 9.99999968E-21 : f32
      %34 = vector.broadcast %cst_24 : f32 to vector<1x2xf32>
      %35 = arith.addf %33, %34 : vector<1x2xf32>
      %36 = arith.mulf %17, %23 : vector<2x2xf32>
      %cst_25 = arith.constant dense<0.000000e+00> : vector<2xf32>
      %37 = vector.multi_reduction <add>, %36, %cst_25 [1] : vector<2x2xf32> to vector<2xf32>
      %38 = vector.shape_cast %37 : vector<2xf32> to vector<2x1xf32>
      %39 = math.sqrt %38 : vector<2x1xf32>
      %cst_26 = arith.constant 9.99999968E-21 : f32
      %40 = vector.broadcast %cst_26 : f32 to vector<2x1xf32>
      %41 = arith.addf %39, %40 : vector<2x1xf32>
      %42 = arith.mulf %17, %23 : vector<2x2xf32>
      %cst_27 = arith.constant dense<0.000000e+00> : vector<2xf32>
      %43 = vector.multi_reduction <add>, %42, %cst_27 [0] : vector<2x2xf32> to vector<2xf32>
      %44 = vector.shape_cast %43 : vector<2xf32> to vector<1x2xf32>
      %45 = math.sqrt %44 : vector<1x2xf32>
      %cst_28 = arith.constant 9.99999968E-21 : f32
      %46 = vector.broadcast %cst_28 : f32 to vector<1x2xf32>
      %47 = arith.addf %45, %46 : vector<1x2xf32>
      %48 = vector.broadcast %29 : vector<2x1xf32> to vector<2x2xf32>
      %49 = vector.broadcast %35 : vector<1x2xf32> to vector<2x2xf32>
      %50 = arith.mulf %48, %49 : vector<2x2xf32>
      %51 = arith.divf %16, %50 : vector<2x2xf32>
      %52 = vector.broadcast %41 : vector<2x1xf32> to vector<2x2xf32>
      %53 = vector.broadcast %47 : vector<1x2xf32> to vector<2x2xf32>
      %54 = arith.mulf %52, %53 : vector<2x2xf32>
      %55 = arith.divf %17, %54 : vector<2x2xf32>
      %56 = arith.mulf %51, %55 : vector<2x2xf32>
      %57 = vector.shape_cast %56 : vector<2x2xf32> to vector<1x2x2xf32>
      %cst_29 = arith.constant dense<0.000000e+00> : vector<1xf32>
      %58 = vector.multi_reduction <add>, %57, %cst_29 [1, 2] : vector<1x2x2xf32> to vector<1xf32>
      %59 = vector.shape_cast %58 : vector<1xf32> to vector<1x1x1xf32>
      %60 = vector.extract %59[0, 0, 0] : f32 from vector<1x1x1xf32>
      %cst_30 = arith.constant 9.53674316E-7 : f32
      %61 = arith.mulf %60, %cst_30 : f32
      %c0_31 = arith.constant 0 : index
      %c0_32 = arith.constant 0 : index
      %62 = memref.load %arg3[%c0_31, %c0_32] : memref<1x1xf32, #tpu.memory_space<smem>>
      memref.store %61, %arg3[%c0_31, %c0_32] : memref<1x1xf32, #tpu.memory_space<smem>>
    } else {
    }
    return
  }
  func.func @transform_0(%arg0: i32) -> (i32, i32) {
    %c0_i32 = arith.constant 0 : i32
    %c0_i32_0 = arith.constant 0 : i32
    return %c0_i32, %arg0 : i32, i32
  }
  func.func @transform_1(%arg0: i32) -> (i32, i32) {
    %c0_i32 = arith.constant 0 : i32
    %c0_i32_0 = arith.constant 0 : i32
    return %c0_i32, %arg0 : i32, i32
  }
  func.func @transform_2(%arg0: i32) -> (i32, i32) {
    %c0_i32 = arith.constant 0 : i32
    %c0_i32_0 = arith.constant 0 : i32
    %c0_i32_1 = arith.constant 0 : i32
    return %c0_i32, %c0_i32_0 : i32, i32
  }
}

</mosaic_0001>

<llo_original>
// kernel: tpu_custom_call.1
$region0: #{tpu_custom_call.1}
  #allocation0 [shape = 'u32[]', space=smem, size = 0x4, offset = 0x4, fixed_abs, tag = 'smem constant byte address 0x4 - core index']
  #allocation1 [shape = 'u32[144,128]{1,0:T(1,128)}', space=vmem, size = 0x12000, scoped, tag = 'internal scratch']
  #allocation2 [shape = 'f32[2,2]{1,0:T(2,128)}', space=vmem, size = 0x400, scoped, tag = 'scratch operand']
  #allocation3 [shape = 'f32[2,2]{1,0:T(2,128)}', space=vmem, size = 0x400, scoped, tag = 'scratch operand']
  %s0 = inlined_call_operand.hbm [shape: f32[2,1024], index: 0, kind: input, shape index: {}]
  %s1 = inlined_call_operand.hbm [shape: f32[2,1024], index: 1, kind: input, shape index: {}]
  %s2 = inlined_call_operand.hbm [shape: f32[1,1], index: 2, kind: output, shape index: {}]
  %s3 = sld [smem:[#allocation0]]
  $region34: #{tpu_custom_call.1} parent=0
    _
  %s5 = ssub.s32 1, %s3
  %s6 = scalar_select 0, %s5, %s3
  $region1: #{tpu_custom_call.1} parent=0
    #allocation4 [shape = 'u8[8192]{0}', space=vmem, size = 0x2000, scoped, tag = 'input window, operand 0, single buffered']
    #allocation5 [shape = 's32[1]{0}', space=sflag, size = 0x4, scoped, tag = 'scoped memory for tpu_custom_call.1']
    #allocation6 [shape = 's32[1]{0}', space=sflag, size = 0x4, scoped, tag = 'scoped memory for tpu_custom_call.1']
    #allocation7 [shape = 'u8[8192]{0}', space=vmem, size = 0x2000, scoped, tag = 'input window, operand 1, single buffered']
    #allocation8 [shape = 's32[1]{0}', space=sflag, size = 0x4, scoped, tag = 'scoped memory for tpu_custom_call.1']
    #allocation9 [shape = 'u8[512]{0}', space=smem, size = 0x200, scoped, tag = 'output window, operand 0, single buffered']
    %7 = vsyncpa [#allocation5], 0
    %8 = vsyncpa [#allocation8], 0
    %9 = vsyncpa [#allocation6], 0
    // Predicated region
    $region2: #{tpu_custom_call.1} parent=1 // pred_check
      _
    $region3: #{tpu_custom_call.1} parent=1 // pred_check_branch
      %11 = sbr.rel (0) target = $region5
    $region4: #{tpu_custom_call.1} parent=1 // pred_region
      %s13 = ssub.s32 256, 256
      %14 = vsyncadd [#allocation5], %s13
      %s16 = sshll.u32 [#allocation4], 4
      %s17 = int_to_ptr.vmem [resolvable:$true] %s16
      %19 = dma.hbm_to_vmem [thread:$0]  %s0, 256, %s17, [#allocation5]
    $region5: #{tpu_custom_call.1} parent=1 // pred_fallthru
      _
    // Predicated region
    $region6: #{tpu_custom_call.1} parent=1 // pred_check
      _
    $region7: #{tpu_custom_call.1} parent=1 // pred_check_branch
      %21 = sbr.rel (0) target = $region9
    $region8: #{tpu_custom_call.1} parent=1 // pred_region
      %s23 = ssub.s32 256, 256
      %24 = vsyncadd [#allocation8], %s23
      %s26 = sshll.u32 [#allocation7], 4
      %s27 = int_to_ptr.vmem [resolvable:$true] %s26
      %29 = dma.hbm_to_vmem [thread:$0]  %s1, 256, %s27, [#allocation8]
    $region9: #{tpu_custom_call.1} parent=1 // pred_fallthru
      _
    // Predicated region
    $region10: #{tpu_custom_call.1} parent=1 // pred_check
      _
    $region11: #{tpu_custom_call.1} parent=1 // pred_check_branch
      %31 = sbr.rel (0) target = $region13
    $region12: #{tpu_custom_call.1} parent=1 // pred_region
      %32 = dma.done [#allocation5], 256
    $region13: #{tpu_custom_call.1} parent=1 // pred_fallthru
      _
    // Predicated region
    $region14: #{tpu_custom_call.1} parent=1 // pred_check
      _
    $region15: #{tpu_custom_call.1} parent=1 // pred_check_branch
      %34 = sbr.rel (0) target = $region17
    $region16: #{tpu_custom_call.1} parent=1 // pred_region
      %35 = dma.done [#allocation8], 256
    $region17: #{tpu_custom_call.1} parent=1 // pred_fallthru
      _
    %p36 = scmp.eq.s32.totalorder 0, 0
    // Predicated region
    $region18: #{tpu_custom_call.1} parent=1 // pred_check
      %p37 = pneg %p36
    $region19: #{tpu_custom_call.1} parent=1 // pred_check_branch
      %39 = sbr.rel (%p37) target = $region21
    $region20: #{tpu_custom_call.1} parent=1 // pred_region
      %vm40 = vcmask 9216
      %41 = vst.msk [vmem:[#allocation2] sm:$0x3] %vm40, 0.0
      %42 = vst.msk [vmem:[#allocation3] sm:$0x3] %vm40, 0.0
    $region21: #{tpu_custom_call.1} parent=1 // pred_fallthru
      _
    %v43 = vld [vmem:[#allocation4] sm:$0xff]
    %v44 = vld [vmem:[#allocation4 + $0x8] sm:$0xff]
    %v45 = vld [vmem:[#allocation7] sm:$0xff]
    %v46 = vld [vmem:[#allocation7 + $0x8] sm:$0xff]
    %v49 = vcombine.high %v43, %v43
    %v51 = vunpack.c.l.s4 1983009808
    %v52 = vunpack.c.0.s8 %v51
    %v53 = vlaneseq
    %v54 = vshrl.u32 %v53, 7
    %v55 = vsub.s32 %v52, %v54
    %v56 = vrot.slane %v43, %v55
    %v58 = vunpack.c.l.s4 1983009808
    %v59 = vunpack.c.0.s8 %v58
    %v60 = vlaneseq
    %v61 = vshrl.u32 %v60, 7
    %v62 = vsub.s32 %v59, %v61
    %v63 = vrot.slane %v49, %v62
    %v64 = vcombine.high %v56, %v56
    %v65 = vcombine.high %v63, %v63
    %v66 = vcombine.high %v44, %v44
    %v68 = vunpack.c.l.s4 1983009808
    %v69 = vunpack.c.0.s8 %v68
    %v70 = vlaneseq
    %v71 = vshrl.u32 %v70, 7
    %v72 = vsub.s32 %v69, %v71
    %v73 = vrot.slane %v44, %v72
    %v75 = vunpack.c.l.s4 1983009808
    %v76 = vunpack.c.0.s8 %v75
    %v77 = vlaneseq
    %v78 = vshrl.u32 %v77, 7
    %v79 = vsub.s32 %v76, %v78
    %v80 = vrot.slane %v66, %v79
    %v81 = vcombine.high %v73, %v73
    %v82 = vcombine.high %v80, %v80
    %91 = vmatprep.subr.mxu0 0.0
    %92 = vmatpush1.xpose.msra.mxu0 0.0
    %93 = vmatprep.subr.mxu0 0.0
    %94 = vmatpush1.xpose.msra.mxu0 0.0
    %95 = vmatprep.subr.mxu0 0.0
    %96 = vmatpush1.xpose.msra.mxu0 0.0
    %97 = vmatprep.subr.mxu0 0.0
    %98 = vmatpush1.xpose.msra.mxu0 0.0
    %99 = vmatprep.subr.mxu0 0.0
    %100 = vmatpush1.xpose.msra.mxu0 0.0
    %101 = vmatprep.subr.mxu0 0.0
    %102 = vmatpush1.xpose.msra.mxu0 0.0
    %103 = vmatprep.subr.mxu0 0.0
    %104 = vmatpush1.xpose.msra.mxu0 0.0
    %105 = vmatprep.subr.mxu0 0.0
    %106 = vmatpush1.xpose.msra.mxu0 0.0
    %107 = vmatprep.subr.mxu0 0.0
    %108 = vmatpush1.xpose.msra.mxu0 0.0
    %109 = vmatprep.subr.mxu0 0.0
    %110 = vmatpush1.xpose.msra.mxu0 0.0
    %111 = vmatprep.subr.mxu0 0.0
    %112 = vmatpush1.xpose.msra.mxu0 0.0
    %113 = vmatprep.subr.mxu0 0.0
    %114 = vmatpush1.xpose.msra.mxu0 0.0
    %115 = vmatprep.subr.mxu0 0.0
    %116 = vmatpush1.xpose.msra.mxu0 0.0
    %117 = vmatprep.subr.mxu0 0.0
    %118 = vmatpush1.xpose.msra.mxu0 0.0
    %119 = vmatprep.subr.mxu0 0.0
    %120 = vmatpush1.xpose.msra.mxu0 0.0
    %121 = vmatprep.subr.mxu0 %v64
    %122 = vmatpush1.xpose.msra.mxu0 %v56
    %123 = vmatprep.subr.mxu0 0.0
    %124 = vmatpush2.xpose.msra.mxu0 0.0
    %125 = vmatprep.subr.mxu0 0.0
    %126 = vmatpush2.xpose.msra.mxu0 0.0
    %127 = vmatprep.subr.mxu0 0.0
    %128 = vmatpush2.xpose.msra.mxu0 0.0
    %129 = vmatprep.subr.mxu0 0.0
    %130 = vmatpush2.xpose.msra.mxu0 0.0
    %131 = vmatprep.subr.mxu0 0.0
    %132 = vmatpush2.xpose.msra.mxu0 0.0
    %133 = vmatprep.subr.mxu0 0.0
    %134 = vmatpush2.xpose.msra.mxu0 0.0
    %135 = vmatprep.subr.mxu0 0.0
    %136 = vmatpush2.xpose.msra.mxu0 0.0
    %137 = vmatprep.subr.mxu0 0.0
    %138 = vmatpush2.xpose.msra.mxu0 0.0
    %139 = vmatprep.subr.mxu0 0.0
    %140 = vmatpush2.xpose.msra.mxu0 0.0
    %141 = vmatprep.subr.mxu0 0.0
    %142 = vmatpush2.xpose.msra.mxu0 0.0
    %143 = vmatprep.subr.mxu0 0.0
    %144 = vmatpush2.xpose.msra.mxu0 0.0
    %145 = vmatprep.subr.mxu0 0.0
    %146 = vmatpush2.xpose.msra.mxu0 0.0
    %147 = vmatprep.subr.mxu0 0.0
    %148 = vmatpush2.xpose.msra.mxu0 0.0
    %149 = vmatprep.subr.mxu0 0.0
    %150 = vmatpush2.xpose.msra.mxu0 0.0
    %151 = vmatprep.subr.mxu0 0.0
    %152 = vmatpush2.xpose.msra.mxu0 0.0
    %153 = vmatprep.subr.mxu0 0.0
    %154 = vmatpush2.xpose.msra.mxu0 0.0
    %155 = vmatprep.mubr.f32.mxu0 %v64
    %156 = vmatmul.mubr.f32.gmra.mxu0 %v56
    %v157 = vpop.f32.mrf.mxu0
    %v158 = vadd.f32 0.0, %v157
    %v159 = vpop.f32.mrf.mxu0
    %160 = vdwg.mxu0
    %161 = vmatprep.subr.mxu0 0.0
    %162 = vmatpush1.xpose.msra.mxu0 0.0
    %163 = vmatprep.subr.mxu0 0.0
    %164 = vmatpush1.xpose.msra.mxu0 0.0
    %165 = vmatprep.subr.mxu0 0.0
    %166 = vmatpush1.xpose.msra.mxu0 0.0
    %167 = vmatprep.subr.mxu0 0.0
    %168 = vmatpush1.xpose.msra.mxu0 0.0
    %169 = vmatprep.subr.mxu0 0.0
    %170 = vmatpush1.xpose.msra.mxu0 0.0
    %171 = vmatprep.subr.mxu0 0.0
    %172 = vmatpush1.xpose.msra.mxu0 0.0
    %173 = vmatprep.subr.mxu0 0.0
    %174 = vmatpush1.xpose.msra.mxu0 0.0
    %175 = vmatprep.subr.mxu0 0.0
    %176 = vmatpush1.xpose.msra.mxu0 0.0
    %177 = vmatprep.subr.mxu0 0.0
    %178 = vmatpush1.xpose.msra.mxu0 0.0
    %179 = vmatprep.subr.mxu0 0.0
    %180 = vmatpush1.xpose.msra.mxu0 0.0
    %181 = vmatprep.subr.mxu0 0.0
    %182 = vmatpush1.xpose.msra.mxu0 0.0
    %183 = vmatprep.subr.mxu0 0.0
    %184 = vmatpush1.xpose.msra.mxu0 0.0
    %185 = vmatprep.subr.mxu0 0.0
    %186 = vmatpush1.xpose.msra.mxu0 0.0
    %187 = vmatprep.subr.mxu0 0.0
    %188 = vmatpush1.xpose.msra.mxu0 0.0
    %189 = vmatprep.subr.mxu0 0.0
    %190 = vmatpush1.xpose.msra.mxu0 0.0
    %191 = vmatprep.subr.mxu0 %v65
    %192 = vmatpush1.xpose.msra.mxu0 %v63
    %193 = vmatprep.subr.mxu0 0.0
    %194 = vmatpush2.xpose.msra.mxu0 0.0
    %195 = vmatprep.subr.mxu0 0.0
    %196 = vmatpush2.xpose.msra.mxu0 0.0
    %197 = vmatprep.subr.mxu0 0.0
    %198 = vmatpush2.xpose.msra.mxu0 0.0
    %199 = vmatprep.subr.mxu0 0.0
    %200 = vmatpush2.xpose.msra.mxu0 0.0
    %201 = vmatprep.subr.mxu0 0.0
    %202 = vmatpush2.xpose.msra.mxu0 0.0
    %203 = vmatprep.subr.mxu0 0.0
    %204 = vmatpush2.xpose.msra.mxu0 0.0
    %205 = vmatprep.subr.mxu0 0.0
    %206 = vmatpush2.xpose.msra.mxu0 0.0
    %207 = vmatprep.subr.mxu0 0.0
    %208 = vmatpush2.xpose.msra.mxu0 0.0
    %209 = vmatprep.subr.mxu0 0.0
    %210 = vmatpush2.xpose.msra.mxu0 0.0
    %211 = vmatprep.subr.mxu0 0.0
    %212 = vmatpush2.xpose.msra.mxu0 0.0
    %213 = vmatprep.subr.mxu0 0.0
    %214 = vmatpush2.xpose.msra.mxu0 0.0
    %215 = vmatprep.subr.mxu0 0.0
    %216 = vmatpush2.xpose.msra.mxu0 0.0
    %217 = vmatprep.subr.mxu0 0.0
    %218 = vmatpush2.xpose.msra.mxu0 0.0
    %219 = vmatprep.subr.mxu0 0.0
    %220 = vmatpush2.xpose.msra.mxu0 0.0
    %221 = vmatprep.subr.mxu0 0.0
    %222 = vmatpush2.xpose.msra.mxu0 0.0
    %223 = vmatprep.subr.mxu0 0.0
    %224 = vmatpush2.xpose.msra.mxu0 0.0
    %225 = vmatprep.mubr.f32.mxu0 %v65
    %226 = vmatmul.mubr.f32.gmra.mxu0 %v63
    %v227 = vpop.f32.mrf.mxu0
    %v228 = vadd.f32 %v158, %v227
    %v229 = vpop.f32.mrf.mxu0
    %230 = vdwg.mxu0
    %231 = vmatprep.subr.mxu0 0.0
    %232 = vmatpush1.xpose.msra.mxu0 0.0
    %233 = vmatprep.subr.mxu0 0.0
    %234 = vmatpush1.xpose.msra.mxu0 0.0
    %235 = vmatprep.subr.mxu0 0.0
    %236 = vmatpush1.xpose.msra.mxu0 0.0
    %237 = vmatprep.subr.mxu0 0.0
    %238 = vmatpush1.xpose.msra.mxu0 0.0
    %239 = vmatprep.subr.mxu0 0.0
    %240 = vmatpush1.xpose.msra.mxu0 0.0
    %241 = vmatprep.subr.mxu0 0.0
    %242 = vmatpush1.xpose.msra.mxu0 0.0
    %243 = vmatprep.subr.mxu0 0.0
    %244 = vmatpush1.xpose.msra.mxu0 0.0
    %245 = vmatprep.subr.mxu0 0.0
    %246 = vmatpush1.xpose.msra.mxu0 0.0
    %247 = vmatprep.subr.mxu0 0.0
    %248 = vmatpush1.xpose.msra.mxu0 0.0
    %249 = vmatprep.subr.mxu0 0.0
    %250 = vmatpush1.xpose.msra.mxu0 0.0
    %251 = vmatprep.subr.mxu0 0.0
    %252 = vmatpush1.xpose.msra.mxu0 0.0
    %253 = vmatprep.subr.mxu0 0.0
    %254 = vmatpush1.xpose.msra.mxu0 0.0
    %255 = vmatprep.subr.mxu0 0.0
    %256 = vmatpush1.xpose.msra.mxu0 0.0
    %257 = vmatprep.subr.mxu0 0.0
    %258 = vmatpush1.xpose.msra.mxu0 0.0
    %259 = vmatprep.subr.mxu0 0.0
    %260 = vmatpush1.xpose.msra.mxu0 0.0
    %261 = vmatprep.subr.mxu0 %v81
    %262 = vmatpush1.xpose.msra.mxu0 %v73
    %263 = vmatprep.subr.mxu0 0.0
    %264 = vmatpush2.xpose.msra.mxu0 0.0
    %265 = vmatprep.subr.mxu0 0.0
    %266 = vmatpush2.xpose.msra.mxu0 0.0
    %267 = vmatprep.subr.mxu0 0.0
    %268 = vmatpush2.xpose.msra.mxu0 0.0
    %269 = vmatprep.subr.mxu0 0.0
    %270 = vmatpush2.xpose.msra.mxu0 0.0
    %271 = vmatprep.subr.mxu0 0.0
    %272 = vmatpush2.xpose.msra.mxu0 0.0
    %273 = vmatprep.subr.mxu0 0.0
    %274 = vmatpush2.xpose.msra.mxu0 0.0
    %275 = vmatprep.subr.mxu0 0.0
    %276 = vmatpush2.xpose.msra.mxu0 0.0
    %277 = vmatprep.subr.mxu0 0.0
    %278 = vmatpush2.xpose.msra.mxu0 0.0
    %279 = vmatprep.subr.mxu0 0.0
    %280 = vmatpush2.xpose.msra.mxu0 0.0
    %281 = vmatprep.subr.mxu0 0.0
    %282 = vmatpush2.xpose.msra.mxu0 0.0
    %283 = vmatprep.subr.mxu0 0.0
    %284 = vmatpush2.xpose.msra.mxu0 0.0
    %285 = vmatprep.subr.mxu0 0.0
    %286 = vmatpush2.xpose.msra.mxu0 0.0
    %287 = vmatprep.subr.mxu0 0.0
    %288 = vmatpush2.xpose.msra.mxu0 0.0
    %289 = vmatprep.subr.mxu0 0.0
    %290 = vmatpush2.xpose.msra.mxu0 0.0
    %291 = vmatprep.subr.mxu0 0.0
    %292 = vmatpush2.xpose.msra.mxu0 0.0
    %293 = vmatprep.subr.mxu0 0.0
    %294 = vmatpush2.xpose.msra.mxu0 0.0
    %295 = vmatprep.mubr.f32.mxu0 %v81
    %296 = vmatmul.mubr.f32.gmra.mxu0 %v73
    %v297 = vpop.f32.mrf.mxu0
    %v298 = vadd.f32 %v228, %v297
    %v299 = vpop.f32.mrf.mxu0
    %300 = vdwg.mxu0
    %301 = vmatprep.subr.mxu0 0.0
    %302 = vmatpush1.xpose.msra.mxu0 0.0
    %303 = vmatprep.subr.mxu0 0.0
    %304 = vmatpush1.xpose.msra.mxu0 0.0
    %305 = vmatprep.subr.mxu0 0.0
    %306 = vmatpush1.xpose.msra.mxu0 0.0
    %307 = vmatprep.subr.mxu0 0.0
    %308 = vmatpush1.xpose.msra.mxu0 0.0
    %309 = vmatprep.subr.mxu0 0.0
    %310 = vmatpush1.xpose.msra.mxu0 0.0
    %311 = vmatprep.subr.mxu0 0.0
    %312 = vmatpush1.xpose.msra.mxu0 0.0
    %313 = vmatprep.subr.mxu0 0.0
    %314 = vmatpush1.xpose.msra.mxu0 0.0
    %315 = vmatprep.subr.mxu0 0.0
    %316 = vmatpush1.xpose.msra.mxu0 0.0
    %317 = vmatprep.subr.mxu0 0.0
    %318 = vmatpush1.xpose.msra.mxu0 0.0
    %319 = vmatprep.subr.mxu0 0.0
    %320 = vmatpush1.xpose.msra.mxu0 0.0
    %321 = vmatprep.subr.mxu0 0.0
    %322 = vmatpush1.xpose.msra.mxu0 0.0
    %323 = vmatprep.subr.mxu0 0.0
    %324 = vmatpush1.xpose.msra.mxu0 0.0
    %325 = vmatprep.subr.mxu0 0.0
    %326 = vmatpush1.xpose.msra.mxu0 0.0
    %327 = vmatprep.subr.mxu0 0.0
    %328 = vmatpush1.xpose.msra.mxu0 0.0
    %329 = vmatprep.subr.mxu0 0.0
    %330 = vmatpush1.xpose.msra.mxu0 0.0
    %331 = vmatprep.subr.mxu0 %v82
    %332 = vmatpush1.xpose.msra.mxu0 %v80
    %333 = vmatprep.subr.mxu0 0.0
    %334 = vmatpush2.xpose.msra.mxu0 0.0
    %335 = vmatprep.subr.mxu0 0.0
    %336 = vmatpush2.xpose.msra.mxu0 0.0
    %337 = vmatprep.subr.mxu0 0.0
    %338 = vmatpush2.xpose.msra.mxu0 0.0
    %339 = vmatprep.subr.mxu0 0.0
    %340 = vmatpush2.xpose.msra.mxu0 0.0
    %341 = vmatprep.subr.mxu0 0.0
    %342 = vmatpush2.xpose.msra.mxu0 0.0
    %343 = vmatprep.subr.mxu0 0.0
    %344 = vmatpush2.xpose.msra.mxu0 0.0
    %345 = vmatprep.subr.mxu0 0.0
    %346 = vmatpush2.xpose.msra.mxu0 0.0
    %347 = vmatprep.subr.mxu0 0.0
    %348 = vmatpush2.xpose.msra.mxu0 0.0
    %349 = vmatprep.subr.mxu0 0.0
    %350 = vmatpush2.xpose.msra.mxu0 0.0
    %351 = vmatprep.subr.mxu0 0.0
    %352 = vmatpush2.xpose.msra.mxu0 0.0
    %353 = vmatprep.subr.mxu0 0.0
    %354 = vmatpush2.xpose.msra.mxu0 0.0
    %355 = vmatprep.subr.mxu0 0.0
    %356 = vmatpush2.xpose.msra.mxu0 0.0
    %357 = vmatprep.subr.mxu0 0.0
    %358 = vmatpush2.xpose.msra.mxu0 0.0
    %359 = vmatprep.subr.mxu0 0.0
    %360 = vmatpush2.xpose.msra.mxu0 0.0
    %361 = vmatprep.subr.mxu0 0.0
    %362 = vmatpush2.xpose.msra.mxu0 0.0
    %363 = vmatprep.subr.mxu0 0.0
    %364 = vmatpush2.xpose.msra.mxu0 0.0
    %365 = vmatprep.mubr.f32.mxu0 %v82
    %366 = vmatmul.mubr.f32.gmra.mxu0 %v80
    %v367 = vpop.f32.mrf.mxu0
    %v368 = vadd.f32 %v298, %v367
    %v369 = vpop.f32.mrf.mxu0
    %370 = vdwg.mxu0
    %v373 = vcombine.high %v45, %v45
    %v375 = vunpack.c.l.s4 1983009808
    %v376 = vunpack.c.0.s8 %v375
    %v377 = vlaneseq
    %v378 = vshrl.u32 %v377, 7
    %v379 = vsub.s32 %v376, %v378
    %v380 = vrot.slane %v45, %v379
    %v382 = vunpack.c.l.s4 1983009808
    %v383 = vunpack.c.0.s8 %v382
    %v384 = vlaneseq
    %v385 = vshrl.u32 %v384, 7
    %v386 = vsub.s32 %v383, %v385
    %v387 = vrot.slane %v373, %v386
    %v388 = vcombine.high %v380, %v380
    %v389 = vcombine.high %v387, %v387
    %v390 = vcombine.high %v46, %v46
    %v392 = vunpack.c.l.s4 1983009808
    %v393 = vunpack.c.0.s8 %v392
    %v394 = vlaneseq
    %v395 = vshrl.u32 %v394, 7
    %v396 = vsub.s32 %v393, %v395
    %v397 = vrot.slane %v46, %v396
    %v399 = vunpack.c.l.s4 1983009808
    %v400 = vunpack.c.0.s8 %v399
    %v401 = vlaneseq
    %v402 = vshrl.u32 %v401, 7
    %v403 = vsub.s32 %v400, %v402
    %v404 = vrot.slane %v390, %v403
    %v405 = vcombine.high %v397, %v397
    %v406 = vcombine.high %v404, %v404
    %415 = vmatprep.subr.mxu0 0.0
    %416 = vmatpush1.xpose.msra.mxu0 0.0
    %417 = vmatprep.subr.mxu0 0.0
    %418 = vmatpush1.xpose.msra.mxu0 0.0
    %419 = vmatprep.subr.mxu0 0.0
    %420 = vmatpush1.xpose.msra.mxu0 0.0
    %421 = vmatprep.subr.mxu0 0.0
    %422 = vmatpush1.xpose.msra.mxu0 0.0
    %423 = vmatprep.subr.mxu0 0.0
    %424 = vmatpush1.xpose.msra.mxu0 0.0
    %425 = vmatprep.subr.mxu0 0.0
    %426 = vmatpush1.xpose.msra.mxu0 0.0
    %427 = vmatprep.subr.mxu0 0.0
    %428 = vmatpush1.xpose.msra.mxu0 0.0
    %429 = vmatprep.subr.mxu0 0.0
    %430 = vmatpush1.xpose.msra.mxu0 0.0
    %431 = vmatprep.subr.mxu0 0.0
    %432 = vmatpush1.xpose.msra.mxu0 0.0
    %433 = vmatprep.subr.mxu0 0.0
    %434 = vmatpush1.xpose.msra.mxu0 0.0
    %435 = vmatprep.subr.mxu0 0.0
    %436 = vmatpush1.xpose.msra.mxu0 0.0
    %437 = vmatprep.subr.mxu0 0.0
    %438 = vmatpush1.xpose.msra.mxu0 0.0
    %439 = vmatprep.subr.mxu0 0.0
    %440 = vmatpush1.xpose.msra.mxu0 0.0
    %441 = vmatprep.subr.mxu0 0.0
    %442 = vmatpush1.xpose.msra.mxu0 0.0
    %443 = vmatprep.subr.mxu0 0.0
    %444 = vmatpush1.xpose.msra.mxu0 0.0
    %445 = vmatprep.subr.mxu0 %v388
    %446 = vmatpush1.xpose.msra.mxu0 %v380
    %447 = vmatprep.subr.mxu0 0.0
    %448 = vmatpush2.xpose.msra.mxu0 0.0
    %449 = vmatprep.subr.mxu0 0.0
    %450 = vmatpush2.xpose.msra.mxu0 0.0
    %451 = vmatprep.subr.mxu0 0.0
    %452 = vmatpush2.xpose.msra.mxu0 0.0
    %453 = vmatprep.subr.mxu0 0.0
    %454 = vmatpush2.xpose.msra.mxu0 0.0
    %455 = vmatprep.subr.mxu0 0.0
    %456 = vmatpush2.xpose.msra.mxu0 0.0
    %457 = vmatprep.subr.mxu0 0.0
    %458 = vmatpush2.xpose.msra.mxu0 0.0
    %459 = vmatprep.subr.mxu0 0.0
    %460 = vmatpush2.xpose.msra.mxu0 0.0
    %461 = vmatprep.subr.mxu0 0.0
    %462 = vmatpush2.xpose.msra.mxu0 0.0
    %463 = vmatprep.subr.mxu0 0.0
    %464 = vmatpush2.xpose.msra.mxu0 0.0
    %465 = vmatprep.subr.mxu0 0.0
    %466 = vmatpush2.xpose.msra.mxu0 0.0
    %467 = vmatprep.subr.mxu0 0.0
    %468 = vmatpush2.xpose.msra.mxu0 0.0
    %469 = vmatprep.subr.mxu0 0.0
    %470 = vmatpush2.xpose.msra.mxu0 0.0
    %471 = vmatprep.subr.mxu0 0.0
    %472 = vmatpush2.xpose.msra.mxu0 0.0
    %473 = vmatprep.subr.mxu0 0.0
    %474 = vmatpush2.xpose.msra.mxu0 0.0
    %475 = vmatprep.subr.mxu0 0.0
    %476 = vmatpush2.xpose.msra.mxu0 0.0
    %477 = vmatprep.subr.mxu0 0.0
    %478 = vmatpush2.xpose.msra.mxu0 0.0
    %479 = vmatprep.mubr.f32.mxu0 %v388
    %480 = vmatmul.mubr.f32.gmra.mxu0 %v380
    %v481 = vpop.f32.mrf.mxu0
    %v482 = vadd.f32 0.0, %v481
    %v483 = vpop.f32.mrf.mxu0
    %484 = vdwg.mxu0
    %485 = vmatprep.subr.mxu0 0.0
    %486 = vmatpush1.xpose.msra.mxu0 0.0
    %487 = vmatprep.subr.mxu0 0.0
    %488 = vmatpush1.xpose.msra.mxu0 0.0
    %489 = vmatprep.subr.mxu0 0.0
    %490 = vmatpush1.xpose.msra.mxu0 0.0
    %491 = vmatprep.subr.mxu0 0.0
    %492 = vmatpush1.xpose.msra.mxu0 0.0
    %493 = vmatprep.subr.mxu0 0.0
    %494 = vmatpush1.xpose.msra.mxu0 0.0
    %495 = vmatprep.subr.mxu0 0.0
    %496 = vmatpush1.xpose.msra.mxu0 0.0
    %497 = vmatprep.subr.mxu0 0.0
    %498 = vmatpush1.xpose.msra.mxu0 0.0
    %499 = vmatprep.subr.mxu0 0.0
    %500 = vmatpush1.xpose.msra.mxu0 0.0
    %501 = vmatprep.subr.mxu0 0.0
    %502 = vmatpush1.xpose.msra.mxu0 0.0
    %503 = vmatprep.subr.mxu0 0.0
    %504 = vmatpush1.xpose.msra.mxu0 0.0
    %505 = vmatprep.subr.mxu0 0.0
    %506 = vmatpush1.xpose.msra.mxu0 0.0
    %507 = vmatprep.subr.mxu0 0.0
    %508 = vmatpush1.xpose.msra.mxu0 0.0
    %509 = vmatprep.subr.mxu0 0.0
    %510 = vmatpush1.xpose.msra.mxu0 0.0
    %511 = vmatprep.subr.mxu0 0.0
    %512 = vmatpush1.xpose.msra.mxu0 0.0
    %513 = vmatprep.subr.mxu0 0.0
    %514 = vmatpush1.xpose.msra.mxu0 0.0
    %515 = vmatprep.subr.mxu0 %v389
    %516 = vmatpush1.xpose.msra.mxu0 %v387
    %517 = vmatprep.subr.mxu0 0.0
    %518 = vmatpush2.xpose.msra.mxu0 0.0
    %519 = vmatprep.subr.mxu0 0.0
    %520 = vmatpush2.xpose.msra.mxu0 0.0
    %521 = vmatprep.subr.mxu0 0.0
    %522 = vmatpush2.xpose.msra.mxu0 0.0
    %523 = vmatprep.subr.mxu0 0.0
    %524 = vmatpush2.xpose.msra.mxu0 0.0
    %525 = vmatprep.subr.mxu0 0.0
    %526 = vmatpush2.xpose.msra.mxu0 0.0
    %527 = vmatprep.subr.mxu0 0.0
    %528 = vmatpush2.xpose.msra.mxu0 0.0
    %529 = vmatprep.subr.mxu0 0.0
    %530 = vmatpush2.xpose.msra.mxu0 0.0
    %531 = vmatprep.subr.mxu0 0.0
    %532 = vmatpush2.xpose.msra.mxu0 0.0
    %533 = vmatprep.subr.mxu0 0.0
    %534 = vmatpush2.xpose.msra.mxu0 0.0
    %535 = vmatprep.subr.mxu0 0.0
    %536 = vmatpush2.xpose.msra.mxu0 0.0
    %537 = vmatprep.subr.mxu0 0.0
    %538 = vmatpush2.xpose.msra.mxu0 0.0
    %539 = vmatprep.subr.mxu0 0.0
    %540 = vmatpush2.xpose.msra.mxu0 0.0
    %541 = vmatprep.subr.mxu0 0.0
    %542 = vmatpush2.xpose.msra.mxu0 0.0
    %543 = vmatprep.subr.mxu0 0.0
    %544 = vmatpush2.xpose.msra.mxu0 0.0
    %545 = vmatprep.subr.mxu0 0.0
    %546 = vmatpush2.xpose.msra.mxu0 0.0
    %547 = vmatprep.subr.mxu0 0.0
    %548 = vmatpush2.xpose.msra.mxu0 0.0
    %549 = vmatprep.mubr.f32.mxu0 %v389
    %550 = vmatmul.mubr.f32.gmra.mxu0 %v387
    %v551 = vpop.f32.mrf.mxu0
    %v552 = vadd.f32 %v482, %v551
    %v553 = vpop.f32.mrf.mxu0
    %554 = vdwg.mxu0
    %555 = vmatprep.subr.mxu0 0.0
    %556 = vmatpush1.xpose.msra.mxu0 0.0
    %557 = vmatprep.subr.mxu0 0.0
    %558 = vmatpush1.xpose.msra.mxu0 0.0
    %559 = vmatprep.subr.mxu0 0.0
    %560 = vmatpush1.xpose.msra.mxu0 0.0
    %561 = vmatprep.subr.mxu0 0.0
    %562 = vmatpush1.xpose.msra.mxu0 0.0
    %563 = vmatprep.subr.mxu0 0.0
    %564 = vmatpush1.xpose.msra.mxu0 0.0
    %565 = vmatprep.subr.mxu0 0.0
    %566 = vmatpush1.xpose.msra.mxu0 0.0
    %567 = vmatprep.subr.mxu0 0.0
    %568 = vmatpush1.xpose.msra.mxu0 0.0
    %569 = vmatprep.subr.mxu0 0.0
    %570 = vmatpush1.xpose.msra.mxu0 0.0
    %571 = vmatprep.subr.mxu0 0.0
    %572 = vmatpush1.xpose.msra.mxu0 0.0
    %573 = vmatprep.subr.mxu0 0.0
    %574 = vmatpush1.xpose.msra.mxu0 0.0
    %575 = vmatprep.subr.mxu0 0.0
    %576 = vmatpush1.xpose.msra.mxu0 0.0
    %577 = vmatprep.subr.mxu0 0.0
    %578 = vmatpush1.xpose.msra.mxu0 0.0
    %579 = vmatprep.subr.mxu0 0.0
    %580 = vmatpush1.xpose.msra.mxu0 0.0
    %581 = vmatprep.subr.mxu0 0.0
    %582 = vmatpush1.xpose.msra.mxu0 0.0
    %583 = vmatprep.subr.mxu0 0.0
    %584 = vmatpush1.xpose.msra.mxu0 0.0
    %585 = vmatprep.subr.mxu0 %v405
    %586 = vmatpush1.xpose.msra.mxu0 %v397
    %587 = vmatprep.subr.mxu0 0.0
    %588 = vmatpush2.xpose.msra.mxu0 0.0
    %589 = vmatprep.subr.mxu0 0.0
    %590 = vmatpush2.xpose.msra.mxu0 0.0
    %591 = vmatprep.subr.mxu0 0.0
    %592 = vmatpush2.xpose.msra.mxu0 0.0
    %593 = vmatprep.subr.mxu0 0.0
    %594 = vmatpush2.xpose.msra.mxu0 0.0
    %595 = vmatprep.subr.mxu0 0.0
    %596 = vmatpush2.xpose.msra.mxu0 0.0
    %597 = vmatprep.subr.mxu0 0.0
    %598 = vmatpush2.xpose.msra.mxu0 0.0
    %599 = vmatprep.subr.mxu0 0.0
    %600 = vmatpush2.xpose.msra.mxu0 0.0
    %601 = vmatprep.subr.mxu0 0.0
    %602 = vmatpush2.xpose.msra.mxu0 0.0
    %603 = vmatprep.subr.mxu0 0.0
    %604 = vmatpush2.xpose.msra.mxu0 0.0
    %605 = vmatprep.subr.mxu0 0.0
    %606 = vmatpush2.xpose.msra.mxu0 0.0
    %607 = vmatprep.subr.mxu0 0.0
    %608 = vmatpush2.xpose.msra.mxu0 0.0
    %609 = vmatprep.subr.mxu0 0.0
    %610 = vmatpush2.xpose.msra.mxu0 0.0
    %611 = vmatprep.subr.mxu0 0.0
    %612 = vmatpush2.xpose.msra.mxu0 0.0
    %613 = vmatprep.subr.mxu0 0.0
    %614 = vmatpush2.xpose.msra.mxu0 0.0
    %615 = vmatprep.subr.mxu0 0.0
    %616 = vmatpush2.xpose.msra.mxu0 0.0
    %617 = vmatprep.subr.mxu0 0.0
    %618 = vmatpush2.xpose.msra.mxu0 0.0
    %619 = vmatprep.mubr.f32.mxu0 %v405
    %620 = vmatmul.mubr.f32.gmra.mxu0 %v397
    %v621 = vpop.f32.mrf.mxu0
    %v622 = vadd.f32 %v552, %v621
    %v623 = vpop.f32.mrf.mxu0
    %624 = vdwg.mxu0
    %625 = vmatprep.subr.mxu0 0.0
    %626 = vmatpush1.xpose.msra.mxu0 0.0
    %627 = vmatprep.subr.mxu0 0.0
    %628 = vmatpush1.xpose.msra.mxu0 0.0
    %629 = vmatprep.subr.mxu0 0.0
    %630 = vmatpush1.xpose.msra.mxu0 0.0
    %631 = vmatprep.subr.mxu0 0.0
    %632 = vmatpush1.xpose.msra.mxu0 0.0
    %633 = vmatprep.subr.mxu0 0.0
    %634 = vmatpush1.xpose.msra.mxu0 0.0
    %635 = vmatprep.subr.mxu0 0.0
    %636 = vmatpush1.xpose.msra.mxu0 0.0
    %637 = vmatprep.subr.mxu0 0.0
    %638 = vmatpush1.xpose.msra.mxu0 0.0
    %639 = vmatprep.subr.mxu0 0.0
    %640 = vmatpush1.xpose.msra.mxu0 0.0
    %641 = vmatprep.subr.mxu0 0.0
    %642 = vmatpush1.xpose.msra.mxu0 0.0
    %643 = vmatprep.subr.mxu0 0.0
    %644 = vmatpush1.xpose.msra.mxu0 0.0
    %645 = vmatprep.subr.mxu0 0.0
    %646 = vmatpush1.xpose.msra.mxu0 0.0
    %647 = vmatprep.subr.mxu0 0.0
    %648 = vmatpush1.xpose.msra.mxu0 0.0
    %649 = vmatprep.subr.mxu0 0.0
    %650 = vmatpush1.xpose.msra.mxu0 0.0
    %651 = vmatprep.subr.mxu0 0.0
    %652 = vmatpush1.xpose.msra.mxu0 0.0
    %653 = vmatprep.subr.mxu0 0.0
    %654 = vmatpush1.xpose.msra.mxu0 0.0
    %655 = vmatprep.subr.mxu0 %v406
    %656 = vmatpush1.xpose.msra.mxu0 %v404
    %657 = vmatprep.subr.mxu0 0.0
    %658 = vmatpush2.xpose.msra.mxu0 0.0
    %659 = vmatprep.subr.mxu0 0.0
    %660 = vmatpush2.xpose.msra.mxu0 0.0
    %661 = vmatprep.subr.mxu0 0.0
    %662 = vmatpush2.xpose.msra.mxu0 0.0
    %663 = vmatprep.subr.mxu0 0.0
    %664 = vmatpush2.xpose.msra.mxu0 0.0
    %665 = vmatprep.subr.mxu0 0.0
    %666 = vmatpush2.xpose.msra.mxu0 0.0
    %667 = vmatprep.subr.mxu0 0.0
    %668 = vmatpush2.xpose.msra.mxu0 0.0
    %669 = vmatprep.subr.mxu0 0.0
    %670 = vmatpush2.xpose.msra.mxu0 0.0
    %671 = vmatprep.subr.mxu0 0.0
    %672 = vmatpush2.xpose.msra.mxu0 0.0
    %673 = vmatprep.subr.mxu0 0.0
    %674 = vmatpush2.xpose.msra.mxu0 0.0
    %675 = vmatprep.subr.mxu0 0.0
    %676 = vmatpush2.xpose.msra.mxu0 0.0
    %677 = vmatprep.subr.mxu0 0.0
    %678 = vmatpush2.xpose.msra.mxu0 0.0
    %679 = vmatprep.subr.mxu0 0.0
    %680 = vmatpush2.xpose.msra.mxu0 0.0
    %681 = vmatprep.subr.mxu0 0.0
    %682 = vmatpush2.xpose.msra.mxu0 0.0
    %683 = vmatprep.subr.mxu0 0.0
    %684 = vmatpush2.xpose.msra.mxu0 0.0
    %685 = vmatprep.subr.mxu0 0.0
    %686 = vmatpush2.xpose.msra.mxu0 0.0
    %687 = vmatprep.subr.mxu0 0.0
    %688 = vmatpush2.xpose.msra.mxu0 0.0
    %689 = vmatprep.mubr.f32.mxu0 %v406
    %690 = vmatmul.mubr.f32.gmra.mxu0 %v404
    %v691 = vpop.f32.mrf.mxu0
    %v692 = vadd.f32 %v622, %v691
    %v693 = vpop.f32.mrf.mxu0
    %694 = vdwg.mxu0
    %v695 = vld [vmem:[#allocation2] sm:$0x3]
    %v696 = vadd.f32 %v695, %v368
    %vm697 = vcmask 9216
    %698 = vst.msk [vmem:[#allocation2] sm:$0x3] %vm697, %v696
    %v699 = vld [vmem:[#allocation3] sm:$0x3]
    %v700 = vadd.f32 %v699, %v692
    %701 = vst.msk [vmem:[#allocation3] sm:$0x3] %vm697, %v700
    // Predicated region
    $region22: #{tpu_custom_call.1} parent=1 // pred_check
      %p702 = pneg %p36
    $region23: #{tpu_custom_call.1} parent=1 // pred_check_branch
      %704 = sbr.rel (%p702) target = $region25
    $region24: #{tpu_custom_call.1} parent=1 // pred_region
      %v705 = vld [vmem:[#allocation2] sm:$0x3]
      %v706 = vld [vmem:[#allocation3] sm:$0x3]
      %v707 = vlaneseq
      %v708 = vshrl.u32 %v707, 7
      %v709 = vlaneseq
      %v710 = vand.u32 %v709, 127
      %vm711 = vcmp.eq.s32.totalorder %v708, %v710
      %v712 = vsel %vm711, 1.0, 0.0
      %v713 = vmul.f32 %v705, %v712
      %v714 = vsel %vm697, %v713, 0.0
      %715 = vadd.xlane.f32.xlu0 %v714
      %v716 = vpop.xlane.xlu0 %715
      %v717 = vrsqrt.pop %v716
      %v718 = vmul.f32 %v716, %v717
      %vm719 = vcmp.eq.f32.partialorder %v716, inf
      %v720 = vsel %vm719, %v716, %v718
      %vm721 = vcmp.eq.f32.partialorder %v716, 0.0
      %v722 = vand.u32 %v716, 2147483648
      %v723 = vsel %vm721, %v722, %v720
      %v724 = vadd.f32 %v723, 1e-20
      %v725 = vrot.slane %v714, 4
      %v726 = vadd.f32 %v714, %v725
      %v727 = vrot.slane %v726, 2
      %v728 = vadd.f32 %v726, %v727
      %v729 = vrot.slane %v728, 1
      %v730 = vadd.f32 %v728, %v729
      %v731 = vrsqrt.pop %v730
      %v732 = vmul.f32 %v730, %v731
      %vm733 = vcmp.eq.f32.partialorder %v730, inf
      %v734 = vsel %vm733, %v730, %v732
      %vm735 = vcmp.eq.f32.partialorder %v730, 0.0
      %v736 = vand.u32 %v730, 2147483648
      %v737 = vsel %vm735, %v736, %v734
      %v738 = vadd.f32 %v737, 1e-20
      %v739 = vmul.f32 %v706, %v712
      %v740 = vsel %vm697, %v739, 0.0
      %741 = vadd.xlane.f32.xlu0 %v740
      %v742 = vpop.xlane.xlu0 %741
      %v743 = vrsqrt.pop %v742
      %v744 = vmul.f32 %v742, %v743
      %vm745 = vcmp.eq.f32.partialorder %v742, inf
      %v746 = vsel %vm745, %v742, %v744
      %vm747 = vcmp.eq.f32.partialorder %v742, 0.0
      %v748 = vand.u32 %v742, 2147483648
      %v749 = vsel %vm747, %v748, %v746
      %v750 = vadd.f32 %v749, 1e-20
      %v751 = vrot.slane %v740, 4
      %v752 = vadd.f32 %v740, %v751
      %v753 = vrot.slane %v752, 2
      %v754 = vadd.f32 %v752, %v753
      %v755 = vrot.slane %v754, 1
      %v756 = vadd.f32 %v754, %v755
      %v757 = vrsqrt.pop %v756
      %v758 = vmul.f32 %v756, %v757
      %vm759 = vcmp.eq.f32.partialorder %v756, inf
      %v760 = vsel %vm759, %v756, %v758
      %vm761 = vcmp.eq.f32.partialorder %v756, 0.0
      %v762 = vand.u32 %v756, 2147483648
      %v763 = vsel %vm761, %v762, %v760
      %v764 = vadd.f32 %v763, 1e-20
      %v765 = vmul.f32 %v724, %v738
      %v766 = vrcp.pop %v765
      %v767 = vmul.f32 %v705, %v766
      %v768 = vmul.f32 %v750, %v764
      %v769 = vrcp.pop %v768
      %v770 = vmul.f32 %v706, %v769
      %v771 = vmul.f32 %v767, %v770
      %v772 = vsel %vm697, %v771, 0.0
      %773 = vadd.xlane.f32.xlu0 %v772
      %v774 = vpop.xlane.xlu0 %773
      %v775 = vrot.slane %v774, 4
      %v776 = vadd.f32 %v774, %v775
      %v777 = vrot.slane %v776, 2
      %v778 = vadd.f32 %v776, %v777
      %v779 = vrot.slane %v778, 1
      %v780 = vadd.f32 %v778, %v779
      %s781 = vtos %v780
      %s782 = smul.f32 %s781, 9.536743e-07
      %s783 = scalar_lea.smem [#allocation9], 0
      %784 = sst [smem:[%s783]] %s782
    $region25: #{tpu_custom_call.1} parent=1 // pred_fallthru
      _
    // Predicated region
    $region26: #{tpu_custom_call.1} parent=1 // pred_check
      _
    $region27: #{tpu_custom_call.1} parent=1 // pred_check_branch
      %786 = sbr.rel (0) target = $region29
    $region28: #{tpu_custom_call.1} parent=1 // pred_region
      %s788 = ssub.s32 16, 16
      %789 = vsyncadd [#allocation6], %s788
      %792 = dma.smem_to_hbm [#allocation9], 16, %s2, [#allocation6]
    $region29: #{tpu_custom_call.1} parent=1 // pred_fallthru
      _
    // Predicated region
    $region30: #{tpu_custom_call.1} parent=1 // pred_check
      _
    $region31: #{tpu_custom_call.1} parent=1 // pred_check_branch
      %794 = sbr.rel (0) target = $region33
    $region32: #{tpu_custom_call.1} parent=1 // pred_region
      %795 = dma.done [#allocation6], 16
    $region33: #{tpu_custom_call.1} parent=1 // pred_fallthru
      _
    %796 = sfence
    %797 = vsyncpa [#allocation5], 1
    %798 = vsyncpa [#allocation8], 1
    %799 = vsyncpa [#allocation6], 1

</llo_original>
